<compile_context>
chip_gen: v7x
topology: tpu7x:2x2x1
jax: 0.10.0
libtpu: 0.0.40
codegen_flags: <defaults>
</compile_context>

<pallas_src>
import functools

import jax
import jax.numpy as jnp
from jax.experimental import pallas as pl
from jax.experimental.pallas import tpu as pltpu


def _margin_loss_kernel(pos_ref, neg_ref, out_ref, acc_ref, *, inv_total):
    i = pl.program_id(0)
    j = pl.program_id(1)

    # Zero the partial-sum accumulator on the very first grid step.
    @pl.when(jnp.logical_and(i == 0, j == 0))
    def _():
        acc_ref[...] = jnp.zeros_like(acc_ref)

    # Cast inside the kernel; keep all arithmetic / accumulation in f32.
    pos = pos_ref[...].astype(jnp.float32)            # (TB, 1)
    neg = neg_ref[...].astype(jnp.float32)            # (TB, TN)

    # Pure-VPU steady state: hinge + elementwise accumulate (no cross-lane work).
    acc_ref[...] += jnp.maximum(1.0 - neg + pos, 0.0)

    # Finalize: single cross-lane reduction + scale, written once to SMEM.
    @pl.when(jnp.logical_and(i == pl.num_programs(0) - 1,
                             j == pl.num_programs(1) - 1))
    def _():
        out_ref[0, 0] = jnp.sum(acc_ref[...]) * inv_total


def margin_loss(positive, negative, *, tb=256, tn=512):
    """positive: (B,), negative: (B, ...) -> scalar f32 loss (PyTorch MarginLoss)."""
    B = positive.shape[0]
    neg2d = negative.reshape(B, -1)          # glue: .view(B, -1)   (native dtype)
    pos2d = positive.reshape(B, 1)           # glue: .unsqueeze(1)  (native dtype)
    N = neg2d.shape[1]

    # Tile sizes: sublane-aligned (x8) rows, lane-dense (x128) columns.
    TB = min(tb, 8 * pl.cdiv(B, 8))
    TN = min(tn, 128 * pl.cdiv(N, 128))
    Bp = TB * pl.cdiv(B, TB)
    Np = TN * pl.cdiv(N, TN)

    if Bp != B or Np != N:
        # Pad negatives with a huge value -> 1 - neg + pos < 0 -> hinge == 0,
        # so padding contributes nothing; the mean still uses the true B*N.
        neg2d = jnp.pad(neg2d, ((0, Bp - B), (0, Np - N)), constant_values=1e30)
        pos2d = jnp.pad(pos2d, ((0, Bp - B), (0, 0)))

    kernel = functools.partial(_margin_loss_kernel, inv_total=1.0 / float(B * N))

    out = pl.pallas_call(
        kernel,
        out_shape=jax.ShapeDtypeStruct((1, 1), jnp.float32),
        grid_spec=pltpu.PrefetchScalarGridSpec(
            num_scalar_prefetch=0,
            grid=(Bp // TB, Np // TN),
            in_specs=[
                pl.BlockSpec((TB, 1), lambda i, j: (i, 0)),
                pl.BlockSpec((TB, TN), lambda i, j: (i, j)),
            ],
            out_specs=pl.BlockSpec(memory_space=pltpu.SMEM),
            scratch_shapes=[pltpu.VMEM((TB, TN), jnp.float32)],
        ),
        compiler_params=pltpu.CompilerParams(
            dimension_semantics=("arbitrary", "arbitrary")),
    )(pos2d, neg2d)
    return out[0, 0]


if __name__ == "__main__":
    kp, kn, kp2, kn2 = jax.random.split(jax.random.PRNGKey(0), 4)

    # Case 1: aligned shapes (single tile).
    B, K = 8, 128
    positive = jax.random.normal(kp, (B,), dtype=jnp.float32)
    negative = jax.random.normal(kn, (B, K), dtype=jnp.float32)
    loss = margin_loss(positive, negative)
    jax.block_until_ready(loss)
    ref = jnp.mean(jnp.maximum(1.0 - negative.reshape(B, -1) + positive[:, None], 0.0))
    assert jnp.allclose(loss, ref, rtol=1e-6, atol=1e-6), (loss, ref)

    # Case 2: unaligned + multi-dim negative -> exercises padding and the
    # multi-step grid accumulation (grid = (3, 2) with tb=8, tn=128).
    B2, K2, D2 = 24, 5, 40
    positive2 = jax.random.normal(kp2, (B2,), dtype=jnp.float32)
    negative2 = jax.random.normal(kn2, (B2, K2, D2), dtype=jnp.float32)
    loss2 = margin_loss(positive2, negative2, tb=8, tn=128)
    jax.block_until_ready(loss2)
    ref2 = jnp.mean(
        jnp.maximum(1.0 - negative2.reshape(B2, -1) + positive2[:, None], 0.0))
    assert jnp.allclose(loss2, ref2, rtol=1e-5, atol=1e-6), (loss2, ref2)

    print("KERNEL_OK")
</pallas_src>

<mosaic_0001>
module attributes {stable_mosaic.version = 11 : i64} {
  func.func @_margin_loss_kernel(%arg0: i32, %arg1: i32, %arg2: memref<8x1xf32, #tpu.memory_space<vmem>>, %arg3: memref<8x128xf32, #tpu.memory_space<vmem>>, %arg4: memref<1x1xf32, #tpu.memory_space<smem>>, %arg5: memref<8x128xf32, #tpu.memory_space<vmem>>) attributes {dimension_semantics = [#tpu.dimension_semantics<arbitrary>, #tpu.dimension_semantics<arbitrary>], iteration_bounds = array<i64: 1, 1>, scalar_prefetch = 0 : i64, scratch_operands = 1 : i64, tpu.core_type = #tpu.core_type<tc>, window_params = [{transform_indices = @transform_0, window_bounds = array<i64: 8, 1>}, {transform_indices = @transform_1, window_bounds = array<i64: 8, 128>}, {transform_indices = @transform_2, window_bounds = array<i64: 1, 1>}]} {
    %c0_i32 = arith.constant 0 : i32
    %0 = arith.cmpi eq, %arg0, %c0_i32 : i32
    %c0_i32_0 = arith.constant 0 : i32
    %1 = arith.cmpi eq, %arg1, %c0_i32_0 : i32
    %2 = arith.andi %0, %1 : i1
    %3 = arith.extui %2 : i1 to i32
    %c0_i32_1 = arith.constant 0 : i32
    %4 = arith.cmpi ne, %3, %c0_i32_1 : i32
    scf.if %4 {
      %cst_13 = arith.constant 0.000000e+00 : f32
      %21 = vector.broadcast %cst_13 : f32 to vector<8x128xf32>
      %c0_14 = arith.constant 0 : index
      %c0_15 = arith.constant 0 : index
      %22 = vector.load %arg5[%c0_14, %c0_15] : memref<8x128xf32, #tpu.memory_space<vmem>>, vector<8x128xf32>
      tpu.vector_store %arg5[%c0_14, %c0_15], %21 {strides = array<i32>} : memref<8x128xf32, #tpu.memory_space<vmem>>, vector<8x128xf32>,
    } else {
    }
    %c0 = arith.constant 0 : index
    %c0_2 = arith.constant 0 : index
    %5 = vector.load %arg2[%c0, %c0_2] : memref<8x1xf32, #tpu.memory_space<vmem>>, vector<8x1xf32>
    %c0_3 = arith.constant 0 : index
    %c0_4 = arith.constant 0 : index
    %6 = vector.load %arg3[%c0_3, %c0_4] : memref<8x128xf32, #tpu.memory_space<vmem>>, vector<8x128xf32>
    %c0_5 = arith.constant 0 : index
    %c0_6 = arith.constant 0 : index
    %7 = vector.load %arg5[%c0_5, %c0_6] : memref<8x128xf32, #tpu.memory_space<vmem>>, vector<8x128xf32>
    %cst = arith.constant 1.000000e+00 : f32
    %8 = vector.broadcast %cst : f32 to vector<8x128xf32>
    %9 = arith.subf %8, %6 : vector<8x128xf32>
    %10 = vector.broadcast %5 : vector<8x1xf32> to vector<8x128xf32>
    %11 = arith.addf %9, %10 : vector<8x128xf32>
    %cst_7 = arith.constant 0.000000e+00 : f32
    %12 = vector.broadcast %cst_7 : f32 to vector<8x128xf32>
    %13 = arith.maximumf %11, %12 : vector<8x128xf32>
    %14 = arith.addf %7, %13 : vector<8x128xf32>
    %c0_8 = arith.constant 0 : index
    %c0_9 = arith.constant 0 : index
    %15 = vector.load %arg5[%c0_8, %c0_9] : memref<8x128xf32, #tpu.memory_space<vmem>>, vector<8x128xf32>
    tpu.vector_store %arg5[%c0_8, %c0_9], %14 {strides = array<i32>} : memref<8x128xf32, #tpu.memory_space<vmem>>, vector<8x128xf32>,
    %c0_i32_10 = arith.constant 0 : i32
    %16 = arith.cmpi eq, %arg0, %c0_i32_10 : i32
    %c0_i32_11 = arith.constant 0 : i32
    %17 = arith.cmpi eq, %arg1, %c0_i32_11 : i32
    %18 = arith.andi %16, %17 : i1
    %19 = arith.extui %18 : i1 to i32
    %c0_i32_12 = arith.constant 0 : i32
    %20 = arith.cmpi ne, %19, %c0_i32_12 : i32
    scf.if %20 {
      %c0_13 = arith.constant 0 : index
      %c0_14 = arith.constant 0 : index
      %21 = vector.load %arg5[%c0_13, %c0_14] : memref<8x128xf32, #tpu.memory_space<vmem>>, vector<8x128xf32>
      %22 = vector.shape_cast %21 : vector<8x128xf32> to vector<1x8x128xf32>
      %cst_15 = arith.constant dense<0.000000e+00> : vector<1xf32>
      %23 = vector.multi_reduction <add>, %22, %cst_15 [1, 2] : vector<1x8x128xf32> to vector<1xf32>
      %24 = vector.shape_cast %23 : vector<1xf32> to vector<1x1x1xf32>
      %25 = vector.extract %24[0, 0, 0] : f32 from vector<1x1x1xf32>
      %cst_16 = arith.constant 9.765625E-4 : f32
      %26 = arith.mulf %25, %cst_16 : f32
      %c0_17 = arith.constant 0 : index
      %c0_18 = arith.constant 0 : index
      %27 = memref.load %arg4[%c0_17, %c0_18] : memref<1x1xf32, #tpu.memory_space<smem>>
      memref.store %26, %arg4[%c0_17, %c0_18] : memref<1x1xf32, #tpu.memory_space<smem>>
    } else {
    }
    return
  }
  func.func @transform_0(%arg0: i32, %arg1: i32) -> (i32, i32) {
    %c0_i32 = arith.constant 0 : i32
    %c0_i32_0 = arith.constant 0 : i32
    return %arg0, %c0_i32 : i32, i32
  }
  func.func @transform_1(%arg0: i32, %arg1: i32) -> (i32, i32) {
    %c0_i32 = arith.constant 0 : i32
    return %arg0, %arg1 : i32, i32
  }
  func.func @transform_2(%arg0: i32, %arg1: i32) -> (i32, i32) {
    %c0_i32 = arith.constant 0 : i32
    %c0_i32_0 = arith.constant 0 : i32
    %c0_i32_1 = arith.constant 0 : i32
    return %c0_i32, %c0_i32_0 : i32, i32
  }
}

</mosaic_0001>

<llo_original>
// kernel: tpu_custom_call.1
$region0: #{tpu_custom_call.1}
  #allocation0 [shape = 'u32[]', space=smem, size = 0x4, offset = 0x4, fixed_abs, tag = 'smem constant byte address 0x4 - core index']
  #allocation1 [shape = 'u32[144,128]{1,0:T(1,128)}', space=vmem, size = 0x12000, scoped, tag = 'internal scratch']
  #allocation2 [shape = 'f32[8,128]{1,0:T(8,128)}', space=vmem, size = 0x1000, scoped, tag = 'scratch operand']
  %s0 = inlined_call_operand.vmem [shape: f32[8,1], index: 0, kind: input, shape index: {}]
  %s1 = inlined_call_operand.vmem [shape: f32[8,128], index: 1, kind: input, shape index: {}]
  %s2 = inlined_call_operand.hbm [shape: f32[1,1], index: 2, kind: output, shape index: {}]
  %s3 = sld [smem:[#allocation0]]
  $region26: #{tpu_custom_call.1} parent=0
    _
  %s5 = ssub.s32 1, %s3
  %s6 = scalar_select 0, %s5, %s3
  $region1: #{tpu_custom_call.1} parent=0
    #allocation3 [shape = 'u8[512]{0}', space=smem, size = 0x200, scoped, tag = 'output window, operand 0, single buffered']
    #allocation4 [shape = 's32[1]{0}', space=sflag, size = 0x4, scoped, tag = 'scoped memory for tpu_custom_call.1']
    %7 = vsyncpa [#allocation4], 0
    // Predicated region
    $region2: #{tpu_custom_call.1} parent=1 // pred_check
      _
    $region3: #{tpu_custom_call.1} parent=1 // pred_check_branch
      %9 = sbr.rel (0) target = $region5
    $region4: #{tpu_custom_call.1} parent=1 // pred_region
      _
    $region5: #{tpu_custom_call.1} parent=1 // pred_fallthru
      _
    // Predicated region
    $region6: #{tpu_custom_call.1} parent=1 // pred_check
      _
    $region7: #{tpu_custom_call.1} parent=1 // pred_check_branch
      %11 = sbr.rel (0) target = $region9
    $region8: #{tpu_custom_call.1} parent=1 // pred_region
      _
    $region9: #{tpu_custom_call.1} parent=1 // pred_fallthru
      _
    %p12 = scmp.eq.s32.totalorder 0, 0
    %p13 = scmp.eq.s32.totalorder 0, 0
    %p14 = pnand %p12, %p13
    %p15 = pneg %p14
    // Predicated region
    $region10: #{tpu_custom_call.1} parent=1 // pred_check
      _
    $region11: #{tpu_custom_call.1} parent=1 // pred_check_branch
      %17 = sbr.rel (%p14) target = $region13
    $region12: #{tpu_custom_call.1} parent=1 // pred_region
      %18 = vst [vmem:[#allocation2] sm:$0xff] 0.0
    $region13: #{tpu_custom_call.1} parent=1 // pred_fallthru
      _
    %v19 = vld [vmem:[%s0] sm:$0xff]
    %v20 = vld [vmem:[%s1] sm:$0xff]
    %v21 = vld [vmem:[#allocation2] sm:$0xff]
    %v22 = vsub.f32 1.0, %v20
    %24 = vset.pattern.permute.xlu0 0
    %25 = vperm.xlu0 %24, %v19
    %v26 = vpop.permute.xlu0 %25
    %v28 = vadd.f32 %v22, %v26
    %v29 = vmax.f32 %v28, 0.0
    %v30 = vadd.f32 %v21, %v29
    %31 = vst [vmem:[#allocation2] sm:$0xff] %v30
    // Predicated region
    $region14: #{tpu_custom_call.1} parent=1 // pred_check
      _
    $region15: #{tpu_custom_call.1} parent=1 // pred_check_branch
      %33 = sbr.rel (%p14) target = $region17
    $region16: #{tpu_custom_call.1} parent=1 // pred_region
      %v34 = vld [vmem:[#allocation2] sm:$0xff]
      %35 = vadd.xlane.f32.xlu0 %v34
      %v36 = vpop.xlane.xlu0 %35
      %v37 = vrot.slane %v36, 4
      %v38 = vadd.f32 %v36, %v37
      %v39 = vrot.slane %v38, 2
      %v40 = vadd.f32 %v38, %v39
      %v41 = vrot.slane %v40, 1
      %v42 = vadd.f32 %v40, %v41
      %s43 = vtos %v42
      %s44 = smul.f32 %s43, 0.0009765625
      %s45 = scalar_lea.smem [#allocation3], 0
      %46 = sst [smem:[%s45]] %s44
    $region17: #{tpu_custom_call.1} parent=1 // pred_fallthru
      _
    // Predicated region
    $region18: #{tpu_custom_call.1} parent=1 // pred_check
      _
    $region19: #{tpu_custom_call.1} parent=1 // pred_check_branch
      %48 = sbr.rel (0) target = $region21
    $region20: #{tpu_custom_call.1} parent=1 // pred_region
      %s50 = ssub.s32 16, 16
      %51 = vsyncadd [#allocation4], %s50
      %54 = dma.smem_to_hbm [#allocation3], 16, %s2, [#allocation4]
    $region21: #{tpu_custom_call.1} parent=1 // pred_fallthru
      _
    // Predicated region
    $region22: #{tpu_custom_call.1} parent=1 // pred_check
      _
    $region23: #{tpu_custom_call.1} parent=1 // pred_check_branch
      %56 = sbr.rel (0) target = $region25
    $region24: #{tpu_custom_call.1} parent=1 // pred_region
      %57 = dma.done [#allocation4], 16
    $region25: #{tpu_custom_call.1} parent=1 // pred_fallthru
      _
    %58 = sfence
    %59 = vsyncpa [#allocation4], 1

</llo_original>
